<compile_context>
chip_gen: v7x
topology: tpu7x:2x2x1
jax: 0.10.0
libtpu: 0.0.40
codegen_flags: <defaults>
</compile_context>

<pallas_src>
import functools

import jax
import jax.numpy as jnp
from jax.experimental import pallas as pl
from jax.experimental.pallas import tpu as pltpu

_LANE_GROUP = 384  # lcm(128 lanes, 3 columns): keeps the weight pattern tile-invariant


def _round_up(x, m):
    return ((x + m - 1) // m) * m


def _round_down(x, m):
    return (x // m) * m


def _vmem_capacity_bytes():
    """Physical VMEM capacity; conservative fallback if the query is unavailable."""
    try:
        info = pltpu.get_tpu_info()
        for name in ("vmem_capacity_bytes", "vmem_size_bytes", "vmem_bytes"):
            v = getattr(info, name, None)
            if v:
                return int(v)
    except Exception:
        pass
    return 64 << 20  # v7x per-TensorCore physical VMEM (smallest of the targets)


def _pick_tile_lanes():
    """Largest lane tile (multiple of 384) whose pipelined buffers fit in VMEM.

    Buffers: 3 inputs x 2 pipeline stages + 1 accumulator = 7 x (1, tb) f32.
    Assume worst-case 8-sublane padding of a (1, tb) tile -> 32 bytes per lane
    per buffer.  Returns (tile_lanes, buffer_budget_bytes).
    """
    vmem = _vmem_capacity_bytes()
    budget = min(vmem // 3, 32 << 20)          # v5e/v6e: 32 MiB; v7x: ~21 MiB
    tb = _round_down(budget // (7 * 32), _LANE_GROUP)
    return max(tb, _LANE_GROUP), budget


def _customloss_kernel(pred_ref, true_ref, w_ref, out_ref, acc_ref,
                       *, tb, total, inv_b, ragged):
    i = pl.program_id(0)
    nt = pl.num_programs(0)

    @pl.when(i == 0)
    def _init():
        acc_ref[...] = jnp.zeros_like(acc_ref)

    def _accumulate(mask_tail):
        # Pure VPU work (sub, mul, add) on a lane-dense (1, tb) tile.
        d = pred_ref[...].astype(jnp.float32) - true_ref[...].astype(jnp.float32)
        sq = d * d
        if mask_tail:
            # Only the final tile can be ragged: zero contributions past 3*B.
            lane = jax.lax.broadcasted_iota(jnp.int32, sq.shape, 1)
            valid = (i * tb + lane) < total
            sq = jnp.where(valid, sq, jnp.float32(0.0))
        acc_ref[...] += sq

    if ragged:
        @pl.when(i < nt - 1)
        def _steady():
            _accumulate(False)

        @pl.when(i == nt - 1)
        def _tail():
            _accumulate(True)
    else:
        _accumulate(False)

    @pl.when(i == nt - 1)
    def _finalize():
        # Per-lane [1, 1, 0.1] column weights (tile-invariant since tb % 3 == 0)
        # and the compile-time 1/B scale, applied exactly once.
        out_ref[0, 0] = jnp.sum(acc_ref[...] * w_ref[...]) * jnp.float32(inv_b)


def customloss(y_pred, y_true, *, max_tile_lanes=None):
    assert y_pred.shape == y_true.shape
    assert y_pred.ndim == 2 and y_pred.shape[1] == 3
    b = y_pred.shape[0]
    total = 3 * b
    inv_b = 1.0 / b

    # Flat lane-dense views of the contiguous (B, 3) inputs: no transpose, no pad.
    pred_flat = y_pred.reshape(1, total)
    true_flat = y_true.reshape(1, total)

    tb, budget = _pick_tile_lanes()
    if max_tile_lanes is not None:
        tb = max(_LANE_GROUP, _round_down(min(tb, max_tile_lanes), _LANE_GROUP))

    if total <= tb:
        # Single block covering the whole (1, 3B) row; block == full array dims,
        # so any lane count is legal and no tail masking is required.
        tb = total
        num_tiles = 1
        ragged = False
    else:
        num_tiles = pl.cdiv(total, tb)
        ragged = (total % tb) != 0

    # Per-lane weight pattern [1, 1, 0.1] repeated across the tile (tb % 3 == 0).
    weights = jnp.tile(jnp.asarray([1.0, 1.0, 0.1], jnp.float32), tb // 3).reshape(1, tb)

    kernel = functools.partial(_customloss_kernel, tb=tb, total=total,
                               inv_b=inv_b, ragged=ragged)

    out = pl.pallas_call(
        kernel,
        out_shape=jax.ShapeDtypeStruct((1, 1), jnp.float32),
        grid_spec=pltpu.PrefetchScalarGridSpec(
            num_scalar_prefetch=0,
            grid=(num_tiles,),
            in_specs=[
                pl.BlockSpec((1, tb), lambda i: (0, i)),
                pl.BlockSpec((1, tb), lambda i: (0, i)),
                pl.BlockSpec((1, tb), lambda i: (0, 0)),   # constant weight tile
            ],
            out_specs=pl.BlockSpec(memory_space=pltpu.SMEM),
            scratch_shapes=[pltpu.VMEM((1, tb), jnp.float32)],
        ),
        compiler_params=pltpu.CompilerParams(
            # "arbitrary" is load-bearing: sequential execution is required for
            # the single VMEM accumulator + pl.when(last) epilogue.
            dimension_semantics=("arbitrary",),
            vmem_limit_bytes=int(budget + (8 << 20)),
        ),
        cost_estimate=pl.CostEstimate(
            flops=3 * total,
            transcendentals=0,
            bytes_accessed=(2 * total + tb) * 4,
        ),
    )(pred_flat, true_flat, weights)
    return out[0, 0]


def _reference(y_pred, y_true):
    d = (y_pred.astype(jnp.float32) - y_true.astype(jnp.float32)) ** 2
    col_mse = jnp.mean(d, axis=0)
    return col_mse[0] + col_mse[1] + 0.1 * col_mse[2]


if __name__ == "__main__":
    key = jax.random.PRNGKey(0)
    k1, k2 = jax.random.split(key)

    # Small shape consistent with the module: (batch, 3). Single-tile path.
    B = 8
    y_pred = jax.random.normal(k1, (B, 3), dtype=jnp.float32)
    y_true = jax.random.normal(k2, (B, 3), dtype=jnp.float32)

    loss = customloss(y_pred, y_true)
    jax.block_until_ready(loss)
    ref = _reference(y_pred, y_true)
    assert jnp.allclose(loss, ref, rtol=1e-5, atol=1e-5), (loss, ref)

    # Exercise the multi-tile streaming path with a ragged (masked) last tile
    # by capping the tile size; stays cheap for this smoke test.
    B2 = 600
    k3, k4 = jax.random.split(k2)
    y_pred2 = jax.random.normal(k3, (B2, 3), dtype=jnp.float32)
    y_true2 = jax.random.normal(k4, (B2, 3), dtype=jnp.float32)
    loss2 = customloss(y_pred2, y_true2, max_tile_lanes=384)
    jax.block_until_ready(loss2)
    ref2 = _reference(y_pred2, y_true2)
    assert jnp.allclose(loss2, ref2, rtol=1e-5, atol=1e-5), (loss2, ref2)

    print("KERNEL_OK")
</pallas_src>

<mosaic_0001>
module attributes {stable_mosaic.version = 11 : i64} {
  func.func @_customloss_kernel(%arg0: i32, %arg1: memref<1x24xf32, #tpu.memory_space<vmem>>, %arg2: memref<1x24xf32, #tpu.memory_space<vmem>>, %arg3: memref<1x24xf32, #tpu.memory_space<vmem>>, %arg4: memref<1x1xf32, #tpu.memory_space<smem>>, %arg5: memref<1x24xf32, #tpu.memory_space<vmem>>) attributes {dimension_semantics = [#tpu.dimension_semantics<arbitrary>], iteration_bounds = array<i64: 1>, scalar_prefetch = 0 : i64, scratch_operands = 1 : i64, tpu.core_type = #tpu.core_type<tc>, window_params = [{transform_indices = @transform_0, window_bounds = array<i64: 1, 24>}, {transform_indices = @transform_1, window_bounds = array<i64: 1, 24>}, {pipeline_mode = #tpu.pipeline_mode<synchronous>, transform_indices = @transform_2, window_bounds = array<i64: 1, 24>}, {transform_indices = @transform_3, window_bounds = array<i64: 1, 1>}]} {
    %c0_i32 = arith.constant 0 : i32
    %0 = arith.cmpi eq, %arg0, %c0_i32 : i32
    %1 = arith.extui %0 : i1 to i32
    %c0_i32_0 = arith.constant 0 : i32
    %2 = arith.cmpi ne, %1, %c0_i32_0 : i32
    scf.if %2 {
      %cst = arith.constant 0.000000e+00 : f32
      %13 = vector.broadcast %cst : f32 to vector<1x24xf32>
      %c0_10 = arith.constant 0 : index
      %c0_11 = arith.constant 0 : index
      %14 = vector.load %arg5[%c0_10, %c0_11] : memref<1x24xf32, #tpu.memory_space<vmem>>, vector<1x24xf32>
      tpu.vector_store %arg5[%c0_10, %c0_11], %13 {strides = array<i32>} : memref<1x24xf32, #tpu.memory_space<vmem>>, vector<1x24xf32>,
    } else {
    }
    %c0 = arith.constant 0 : index
    %c0_1 = arith.constant 0 : index
    %3 = vector.load %arg1[%c0, %c0_1] : memref<1x24xf32, #tpu.memory_space<vmem>>, vector<1x24xf32>
    %c0_2 = arith.constant 0 : index
    %c0_3 = arith.constant 0 : index
    %4 = vector.load %arg2[%c0_2, %c0_3] : memref<1x24xf32, #tpu.memory_space<vmem>>, vector<1x24xf32>
    %5 = arith.subf %3, %4 : vector<1x24xf32>
    %6 = arith.mulf %5, %5 : vector<1x24xf32>
    %c0_4 = arith.constant 0 : index
    %c0_5 = arith.constant 0 : index
    %7 = vector.load %arg5[%c0_4, %c0_5] : memref<1x24xf32, #tpu.memory_space<vmem>>, vector<1x24xf32>
    %8 = arith.addf %7, %6 : vector<1x24xf32>
    %c0_6 = arith.constant 0 : index
    %c0_7 = arith.constant 0 : index
    %9 = vector.load %arg5[%c0_6, %c0_7] : memref<1x24xf32, #tpu.memory_space<vmem>>, vector<1x24xf32>
    tpu.vector_store %arg5[%c0_6, %c0_7], %8 {strides = array<i32>} : memref<1x24xf32, #tpu.memory_space<vmem>>, vector<1x24xf32>,
    %c0_i32_8 = arith.constant 0 : i32
    %10 = arith.cmpi eq, %arg0, %c0_i32_8 : i32
    %11 = arith.extui %10 : i1 to i32
    %c0_i32_9 = arith.constant 0 : i32
    %12 = arith.cmpi ne, %11, %c0_i32_9 : i32
    scf.if %12 {
      %c0_10 = arith.constant 0 : index
      %c0_11 = arith.constant 0 : index
      %13 = vector.load %arg5[%c0_10, %c0_11] : memref<1x24xf32, #tpu.memory_space<vmem>>, vector<1x24xf32>
      %c0_12 = arith.constant 0 : index
      %c0_13 = arith.constant 0 : index
      %14 = vector.load %arg3[%c0_12, %c0_13] : memref<1x24xf32, #tpu.memory_space<vmem>>, vector<1x24xf32>
      %15 = arith.mulf %13, %14 : vector<1x24xf32>
      %16 = vector.shape_cast %15 : vector<1x24xf32> to vector<1x1x24xf32>
      %cst = arith.constant dense<0.000000e+00> : vector<1xf32>
      %17 = vector.multi_reduction <add>, %16, %cst [1, 2] : vector<1x1x24xf32> to vector<1xf32>
      %18 = vector.shape_cast %17 : vector<1xf32> to vector<1x1x1xf32>
      %19 = vector.extract %18[0, 0, 0] : f32 from vector<1x1x1xf32>
      %cst_14 = arith.constant 1.250000e-01 : f32
      %20 = arith.mulf %19, %cst_14 : f32
      %c0_15 = arith.constant 0 : index
      %c0_16 = arith.constant 0 : index
      %21 = memref.load %arg4[%c0_15, %c0_16] : memref<1x1xf32, #tpu.memory_space<smem>>
      memref.store %20, %arg4[%c0_15, %c0_16] : memref<1x1xf32, #tpu.memory_space<smem>>
    } else {
    }
    return
  }
  func.func @transform_0(%arg0: i32) -> (i32, i32) {
    %c0_i32 = arith.constant 0 : i32
    %c0_i32_0 = arith.constant 0 : i32
    return %c0_i32, %arg0 : i32, i32
  }
  func.func @transform_1(%arg0: i32) -> (i32, i32) {
    %c0_i32 = arith.constant 0 : i32
    %c0_i32_0 = arith.constant 0 : i32
    return %c0_i32, %arg0 : i32, i32
  }
  func.func @transform_2(%arg0: i32) -> (i32, i32) {
    %c0_i32 = arith.constant 0 : i32
    %c0_i32_0 = arith.constant 0 : i32
    %c0_i32_1 = arith.constant 0 : i32
    return %c0_i32, %c0_i32_0 : i32, i32
  }
  func.func @transform_3(%arg0: i32) -> (i32, i32) {
    %c0_i32 = arith.constant 0 : i32
    %c0_i32_0 = arith.constant 0 : i32
    %c0_i32_1 = arith.constant 0 : i32
    return %c0_i32, %c0_i32_0 : i32, i32
  }
}

</mosaic_0001>

<llo_original>
// kernel: tpu_custom_call.1
$region0: #{tpu_custom_call.1}
  #allocation0 [shape = 'u32[]', space=smem, size = 0x4, offset = 0x4, fixed_abs, tag = 'smem constant byte address 0x4 - core index']
  #allocation1 [shape = 'u32[144,128]{1,0:T(1,128)}', space=vmem, size = 0x12000, scoped, tag = 'internal scratch']
  #allocation2 [shape = 'f32[1,24]{1,0:T(1,128)}', space=vmem, size = 0x200, scoped, tag = 'scratch operand']
  %s0 = inlined_call_operand.hbm [shape: f32[1,24], index: 0, kind: input, shape index: {}]
  %s1 = inlined_call_operand.vmem [shape: f32[1,24], index: 1, kind: input, shape index: {}]
  %s2 = inlined_call_operand.vmem [shape: f32[1,24], index: 2, kind: input, shape index: {}]
  %s3 = inlined_call_operand.hbm [shape: f32[1,1], index: 3, kind: output, shape index: {}]
  %s4 = sld [smem:[#allocation0]]
  $region34: #{tpu_custom_call.1} parent=0
    _
  %s6 = ssub.s32 1, %s4
  %s7 = scalar_select 0, %s6, %s4
  $region1: #{tpu_custom_call.1} parent=0
    #allocation3 [shape = 'u8[512]{0}', space=vmem, size = 0x400, scoped, tag = 'input window, operand 0, single buffered']
    #allocation4 [shape = 's32[1]{0}', space=sflag, size = 0x4, scoped, tag = 'scoped memory for tpu_custom_call.1']
    #allocation5 [shape = 's32[1]{0}', space=sflag, size = 0x4, scoped, tag = 'scoped memory for tpu_custom_call.1']
    #allocation6 [shape = 'u8[512]{0}', space=smem, size = 0x200, scoped, tag = 'output window, operand 0, single buffered']
    %8 = vsyncpa [#allocation4], 0
    %9 = vsyncpa [#allocation5], 0
    // Predicated region
    $region2: #{tpu_custom_call.1} parent=1 // pred_check
      _
    $region3: #{tpu_custom_call.1} parent=1 // pred_check_branch
      %11 = sbr.rel (0) target = $region5
    $region4: #{tpu_custom_call.1} parent=1 // pred_region
      %s13 = ssub.s32 16, 16
      %14 = vsyncadd [#allocation4], %s13
      %s16 = sshll.u32 [#allocation3], 4
      %s17 = int_to_ptr.vmem [resolvable:$true] %s16
      %19 = dma.hbm_to_vmem [thread:$0]  %s0, 16, %s17, [#allocation4]
    $region5: #{tpu_custom_call.1} parent=1 // pred_fallthru
      _
    // Predicated region
    $region6: #{tpu_custom_call.1} parent=1 // pred_check
      _
    $region7: #{tpu_custom_call.1} parent=1 // pred_check_branch
      %21 = sbr.rel (0) target = $region9
    $region8: #{tpu_custom_call.1} parent=1 // pred_region
      _
    $region9: #{tpu_custom_call.1} parent=1 // pred_fallthru
      _
    // Predicated region
    $region10: #{tpu_custom_call.1} parent=1 // pred_check
      _
    $region11: #{tpu_custom_call.1} parent=1 // pred_check_branch
      %23 = sbr.rel (0) target = $region13
    $region12: #{tpu_custom_call.1} parent=1 // pred_region
      _
    $region13: #{tpu_custom_call.1} parent=1 // pred_fallthru
      _
    // Predicated region
    $region14: #{tpu_custom_call.1} parent=1 // pred_check
      _
    $region15: #{tpu_custom_call.1} parent=1 // pred_check_branch
      %25 = sbr.rel (0) target = $region17
    $region16: #{tpu_custom_call.1} parent=1 // pred_region
      %26 = dma.done [#allocation4], 16
    $region17: #{tpu_custom_call.1} parent=1 // pred_fallthru
      _
    %p27 = scmp.eq.s32.totalorder 0, 0
    // Predicated region
    $region18: #{tpu_custom_call.1} parent=1 // pred_check
      %p28 = pneg %p27
    $region19: #{tpu_custom_call.1} parent=1 // pred_check_branch
      %30 = sbr.rel (%p28) target = $region21
    $region20: #{tpu_custom_call.1} parent=1 // pred_region
      %vm31 = vcmask 188416
      %32 = vst.msk [vmem:[#allocation2] sm:$0x1] %vm31, 0.0
    $region21: #{tpu_custom_call.1} parent=1 // pred_fallthru
      _
    %v33 = vld [vmem:[#allocation3] sm:$0x1]
    %v34 = vld [vmem:[%s1] sm:$0x1]
    %v35 = vsub.f32 %v33, %v34
    %v36 = vmul.f32 %v35, %v35
    %v37 = vld [vmem:[#allocation2] sm:$0x1]
    %v38 = vadd.f32 %v37, %v36
    %vm39 = vcmask 188416
    %40 = vst.msk [vmem:[#allocation2] sm:$0x1] %vm39, %v38
    // Predicated region
    $region22: #{tpu_custom_call.1} parent=1 // pred_check
      %p41 = pneg %p27
    $region23: #{tpu_custom_call.1} parent=1 // pred_check_branch
      %43 = sbr.rel (%p41) target = $region25
    $region24: #{tpu_custom_call.1} parent=1 // pred_region
      %v44 = vld [vmem:[#allocation2] sm:$0x1]
      %v45 = vld [vmem:[%s2] sm:$0x1]
      %v46 = vmul.f32 %v44, %v45
      %v47 = vsel %vm39, %v46, 0.0
      %48 = vadd.xlane.f32.xlu0 %v47
      %v49 = vpop.xlane.xlu0 %48
      %v50 = vrot.slane %v49, 4
      %v51 = vadd.f32 %v49, %v50
      %v52 = vrot.slane %v51, 2
      %v53 = vadd.f32 %v51, %v52
      %v54 = vrot.slane %v53, 1
      %v55 = vadd.f32 %v53, %v54
      %s56 = vtos %v55
      %s57 = smul.f32 %s56, 0.125
      %s58 = scalar_lea.smem [#allocation6], 0
      %59 = sst [smem:[%s58]] %s57
    $region25: #{tpu_custom_call.1} parent=1 // pred_fallthru
      _
    // Predicated region
    $region26: #{tpu_custom_call.1} parent=1 // pred_check
      _
    $region27: #{tpu_custom_call.1} parent=1 // pred_check_branch
      %61 = sbr.rel (0) target = $region29
    $region28: #{tpu_custom_call.1} parent=1 // pred_region
      %s63 = ssub.s32 16, 16
      %64 = vsyncadd [#allocation5], %s63
      %67 = dma.smem_to_hbm [#allocation6], 16, %s3, [#allocation5]
    $region29: #{tpu_custom_call.1} parent=1 // pred_fallthru
      _
    // Predicated region
    $region30: #{tpu_custom_call.1} parent=1 // pred_check
      _
    $region31: #{tpu_custom_call.1} parent=1 // pred_check_branch
      %69 = sbr.rel (0) target = $region33
    $region32: #{tpu_custom_call.1} parent=1 // pred_region
      %70 = dma.done [#allocation5], 16
    $region33: #{tpu_custom_call.1} parent=1 // pred_fallthru
      _
    %71 = sfence
    %72 = vsyncpa [#allocation4], 1
    %73 = vsyncpa [#allocation5], 1

</llo_original>
